<compile_context>
chip_gen: v7x
topology: tpu7x:2x2x1
jax: 0.10.0
libtpu: 0.0.40
codegen_flags: <defaults>
</compile_context>

<pallas_src>
import jax
import jax.numpy as jnp
from jax.experimental import pallas as pl
from jax.experimental.pallas import tpu as pltpu


def _round_up(x, m):
    return (x + m - 1) // m * m


# ----------------------------- Pallas kernel -------------------------------
def ncf_mlp_kernel(ue_ref, ie_ref, cf_ref,          # (E, TB), (E, TB), (C, TB)
                   w1u_ref, w1i_ref, w1c_ref,       # (64, E), (64, E), (64, C)
                   b1_ref, w2_ref,                  # (64, 1), (64, 1)   f32
                   b2_ref,                          # (1, 1) f32 in SMEM
                   out_ref):                        # (1, 1, TB) f32
    # Layer 1: fused "concat" = sum of three partial matmuls, f32 accumulate.
    h = jnp.dot(w1u_ref[...], ue_ref[...], preferred_element_type=jnp.float32)
    h += jnp.dot(w1i_ref[...], ie_ref[...], preferred_element_type=jnp.float32)
    h += jnp.dot(w1c_ref[...], cf_ref[...], preferred_element_type=jnp.float32)
    h += b1_ref[...]                      # (64, 1) broadcasts over lanes
    h = jnp.maximum(h, 0.0)               # ReLU, (64, TB)

    # Layer 2 (out_features = 1): VPU multiply + sublane reduce instead of an
    # N=1 MXU matmul.  Result is a lane-dense (1, TB) row.
    y = jnp.sum(h * w2_ref[...], axis=0, keepdims=True) + b2_ref[0, 0]
    out_ref[0] = y.astype(out_ref.dtype)


# ------------------------------ NCF forward --------------------------------
def ncf_forward(params, user_ids, item_ids, content_features,
                *, activation_dtype=jnp.float32, batch_tile=2048):
    B = user_ids.shape[0]
    E = params["user_embedding"].shape[1]
    C = content_features.shape[1]

    # Batch tile: multiple of 128 (lane width), large for DMA/compute overlap.
    TB = min(batch_tile, _round_up(B, 128))
    B_pad = _round_up(B, TB)
    pad = B_pad - B
    num_tiles = B_pad // TB

    # Embedding gathers in XLA, then lay batch along the minor (lane) axis.
    uid = jnp.pad(user_ids, (0, pad))
    iid = jnp.pad(item_ids, (0, pad))
    cf = jnp.pad(content_features, ((0, pad), (0, 0)))

    ue_t = params["user_embedding"][uid].T.astype(activation_dtype)   # (E, B_pad)
    ie_t = params["item_embedding"][iid].T.astype(activation_dtype)   # (E, B_pad)
    cf_t = cf.T.astype(activation_dtype)                              # (C, B_pad)

    # Split W1 into the three "concat" partitions (transposed: (64, in)).
    w1 = params["w1"]                                  # (2E + C, 64)
    w1u_t = w1[:E].T.astype(activation_dtype)          # (64, E)
    w1i_t = w1[E:2 * E].T.astype(activation_dtype)     # (64, E)
    w1c_t = w1[2 * E:].T.astype(activation_dtype)      # (64, C)
    b1_col = params["b1"].reshape(-1, 1).astype(jnp.float32)   # (64, 1)
    w2_col = params["w2"].reshape(-1, 1).astype(jnp.float32)   # (64, 1)
    b2 = params["b2"].reshape(1, 1).astype(jnp.float32)        # (1, 1)

    out = pl.pallas_call(
        ncf_mlp_kernel,
        out_shape=jax.ShapeDtypeStruct((num_tiles, 1, TB), jnp.float32),
        grid=(num_tiles,),
        in_specs=[
            # Activation streams: tiled along the batch (lane) axis.
            pl.BlockSpec((E, TB), lambda i: (0, i)),
            pl.BlockSpec((E, TB), lambda i: (0, i)),
            pl.BlockSpec((C, TB), lambda i: (0, i)),
            # Weights / biases: grid-invariant full blocks (stay resident in VMEM).
            pl.BlockSpec(w1u_t.shape, lambda i: (0, 0)),
            pl.BlockSpec(w1i_t.shape, lambda i: (0, 0)),
            pl.BlockSpec(w1c_t.shape, lambda i: (0, 0)),
            pl.BlockSpec(b1_col.shape, lambda i: (0, 0)),
            pl.BlockSpec(w2_col.shape, lambda i: (0, 0)),
            # b2 as an SMEM scalar.
            pl.BlockSpec(memory_space=pltpu.SMEM),
        ],
        out_specs=pl.BlockSpec((1, 1, TB), lambda i: (i, 0, 0)),
        compiler_params=pltpu.CompilerParams(
            dimension_semantics=("parallel",),
        ),
    )(ue_t, ie_t, cf_t, w1u_t, w1i_t, w1c_t, b1_col, w2_col, b2)

    # (num_tiles, 1, TB) row-major flatten == batch order; drop padding.
    return out.reshape(B_pad, 1)[:B]


def init_params(key, num_users, num_items, embedding_dim, content_dim):
    k1, k2, k3, k4, k5, k6 = jax.random.split(key, 6)
    d_in = embedding_dim * 2 + content_dim
    bound1 = 1.0 / jnp.sqrt(d_in)
    bound2 = 1.0 / jnp.sqrt(64.0)
    return {
        # nn.Embedding default init: N(0, 1)
        "user_embedding": jax.random.normal(k1, (num_users, embedding_dim), jnp.float32),
        "item_embedding": jax.random.normal(k2, (num_items, embedding_dim), jnp.float32),
        # nn.Linear default init: U(-1/sqrt(fan_in), 1/sqrt(fan_in)); stored (in, out)
        "w1": jax.random.uniform(k3, (d_in, 64), jnp.float32, -bound1, bound1),
        "b1": jax.random.uniform(k4, (1, 64), jnp.float32, -bound1, bound1),
        "w2": jax.random.uniform(k5, (64, 1), jnp.float32, -bound2, bound2),
        "b2": jax.random.uniform(k6, (1, 1), jnp.float32, -bound2, bound2),
    }


# --------------------------------- main -------------------------------------
if __name__ == "__main__":
    num_users, num_items = 32, 48
    embedding_dim, content_dim = 16, 8
    batch = 8

    key = jax.random.PRNGKey(0)
    kp, ku, ki, kc = jax.random.split(key, 4)

    params = init_params(kp, num_users, num_items, embedding_dim, content_dim)
    user_ids = jax.random.randint(ku, (batch,), 0, num_users)
    item_ids = jax.random.randint(ki, (batch,), 0, num_items)
    content_features = jax.random.normal(kc, (batch, content_dim), jnp.float32)

    # f32 path (exact module semantics).
    out_f32 = jax.block_until_ready(
        ncf_forward(params, user_ids, item_ids, content_features,
                    activation_dtype=jnp.float32))
    # bf16 activation-stream path (bandwidth optimization; f32 accumulate).
    out_bf16 = jax.block_until_ready(
        ncf_forward(params, user_ids, item_ids, content_features,
                    activation_dtype=jnp.bfloat16))

    # Pure-JAX reference check.
    x = jnp.concatenate(
        [params["user_embedding"][user_ids],
         params["item_embedding"][item_ids],
         content_features], axis=-1)
    ref = jnp.maximum(x @ params["w1"] + params["b1"], 0.0) @ params["w2"] + params["b2"]

    assert out_f32.shape == (batch, 1)
    assert out_bf16.shape == (batch, 1)
    assert jnp.allclose(out_f32, ref, atol=1e-4, rtol=1e-4)
    assert jnp.allclose(out_bf16, ref, atol=5e-2, rtol=5e-2)

    print("KERNEL_OK")
</pallas_src>

<mosaic_0001>
module attributes {stable_mosaic.version = 11 : i64} {
  func.func @ncf_mlp_kernel(%arg0: i32, %arg1: memref<16x128xf32, #tpu.memory_space<vmem>>, %arg2: memref<16x128xf32, #tpu.memory_space<vmem>>, %arg3: memref<8x128xf32, #tpu.memory_space<vmem>>, %arg4: memref<64x16xf32, #tpu.memory_space<vmem>>, %arg5: memref<64x16xf32, #tpu.memory_space<vmem>>, %arg6: memref<64x8xf32, #tpu.memory_space<vmem>>, %arg7: memref<64x1xf32, #tpu.memory_space<vmem>>, %arg8: memref<64x1xf32, #tpu.memory_space<vmem>>, %arg9: memref<1x1xf32, #tpu.memory_space<smem>>, %arg10: memref<1x1x128xf32, #tpu.memory_space<vmem>>) attributes {dimension_semantics = [#tpu.dimension_semantics<parallel>], iteration_bounds = array<i64: 1>, scalar_prefetch = 0 : i64, scratch_operands = 0 : i64, tpu.core_type = #tpu.core_type<tc>, window_params = [{transform_indices = @transform_0, window_bounds = array<i64: 16, 128>}, {transform_indices = @transform_1, window_bounds = array<i64: 16, 128>}, {transform_indices = @transform_2, window_bounds = array<i64: 8, 128>}, {pipeline_mode = #tpu.pipeline_mode<synchronous>, transform_indices = @transform_3, window_bounds = array<i64: 64, 16>}, {pipeline_mode = #tpu.pipeline_mode<synchronous>, transform_indices = @transform_4, window_bounds = array<i64: 64, 16>}, {pipeline_mode = #tpu.pipeline_mode<synchronous>, transform_indices = @transform_5, window_bounds = array<i64: 64, 8>}, {pipeline_mode = #tpu.pipeline_mode<synchronous>, transform_indices = @transform_6, window_bounds = array<i64: 64, 1>}, {pipeline_mode = #tpu.pipeline_mode<synchronous>, transform_indices = @transform_7, window_bounds = array<i64: 64, 1>}, {transform_indices = @transform_8, window_bounds = array<i64: 1, 1>}, {transform_indices = @transform_9, window_bounds = array<i64: 1, 1, 128>}]} {
    %c0 = arith.constant 0 : index
    %c0_0 = arith.constant 0 : index
    %0 = vector.load %arg4[%c0, %c0_0] : memref<64x16xf32, #tpu.memory_space<vmem>>, vector<64x16xf32>
    %c0_1 = arith.constant 0 : index
    %c0_2 = arith.constant 0 : index
    %1 = vector.load %arg1[%c0_1, %c0_2] : memref<16x128xf32, #tpu.memory_space<vmem>>, vector<16x128xf32>
    %cst = arith.constant dense<0.000000e+00> : vector<64x128xf32>
    %2 = tpu.matmul %0, %1, %cst {dimension_numbers = #tpu.dot_dimension_numbers<[1], [0], [0], [1], [0, 0, 1, 1], [], []>} : vector<64x16xf32>, vector<16x128xf32>, vector<64x128xf32> -> vector<64x128xf32>
    %c0_3 = arith.constant 0 : index
    %c0_4 = arith.constant 0 : index
    %3 = vector.load %arg5[%c0_3, %c0_4] : memref<64x16xf32, #tpu.memory_space<vmem>>, vector<64x16xf32>
    %c0_5 = arith.constant 0 : index
    %c0_6 = arith.constant 0 : index
    %4 = vector.load %arg2[%c0_5, %c0_6] : memref<16x128xf32, #tpu.memory_space<vmem>>, vector<16x128xf32>
    %cst_7 = arith.constant dense<0.000000e+00> : vector<64x128xf32>
    %5 = tpu.matmul %3, %4, %cst_7 {dimension_numbers = #tpu.dot_dimension_numbers<[1], [0], [0], [1], [0, 0, 1, 1], [], []>} : vector<64x16xf32>, vector<16x128xf32>, vector<64x128xf32> -> vector<64x128xf32>
    %6 = arith.addf %2, %5 : vector<64x128xf32>
    %c0_8 = arith.constant 0 : index
    %c0_9 = arith.constant 0 : index
    %7 = vector.load %arg6[%c0_8, %c0_9] : memref<64x8xf32, #tpu.memory_space<vmem>>, vector<64x8xf32>
    %c0_10 = arith.constant 0 : index
    %c0_11 = arith.constant 0 : index
    %8 = vector.load %arg3[%c0_10, %c0_11] : memref<8x128xf32, #tpu.memory_space<vmem>>, vector<8x128xf32>
    %cst_12 = arith.constant dense<0.000000e+00> : vector<64x128xf32>
    %9 = tpu.matmul %7, %8, %cst_12 {dimension_numbers = #tpu.dot_dimension_numbers<[1], [0], [0], [1], [0, 0, 1, 1], [], []>} : vector<64x8xf32>, vector<8x128xf32>, vector<64x128xf32> -> vector<64x128xf32>
    %10 = arith.addf %6, %9 : vector<64x128xf32>
    %c0_13 = arith.constant 0 : index
    %c0_14 = arith.constant 0 : index
    %11 = vector.load %arg7[%c0_13, %c0_14] : memref<64x1xf32, #tpu.memory_space<vmem>>, vector<64x1xf32>
    %12 = vector.broadcast %11 : vector<64x1xf32> to vector<64x128xf32>
    %13 = arith.addf %10, %12 : vector<64x128xf32>
    %cst_15 = arith.constant 0.000000e+00 : f32
    %14 = vector.broadcast %cst_15 : f32 to vector<64x128xf32>
    %15 = arith.maximumf %13, %14 : vector<64x128xf32>
    %c0_16 = arith.constant 0 : index
    %c0_17 = arith.constant 0 : index
    %16 = vector.load %arg8[%c0_16, %c0_17] : memref<64x1xf32, #tpu.memory_space<vmem>>, vector<64x1xf32>
    %17 = vector.broadcast %16 : vector<64x1xf32> to vector<64x128xf32>
    %18 = arith.mulf %15, %17 : vector<64x128xf32>
    %cst_18 = arith.constant dense<0.000000e+00> : vector<128xf32>
    %19 = vector.multi_reduction <add>, %18, %cst_18 [0] : vector<64x128xf32> to vector<128xf32>
    %20 = vector.shape_cast %19 : vector<128xf32> to vector<1x128xf32>
    %c0_19 = arith.constant 0 : index
    %c0_20 = arith.constant 0 : index
    %21 = memref.load %arg9[%c0_19, %c0_20] : memref<1x1xf32, #tpu.memory_space<smem>>
    %22 = vector.broadcast %21 : f32 to vector<1x128xf32>
    %23 = arith.addf %20, %22 : vector<1x128xf32>
    %c0_21 = arith.constant 0 : index
    %c0_22 = arith.constant 0 : index
    %c0_23 = arith.constant 0 : index
    %24 = vector.load %arg10[%c0_21, %c0_22, %c0_23] : memref<1x1x128xf32, #tpu.memory_space<vmem>>, vector<1x1x128xf32>
    %25 = vector.shape_cast %24 : vector<1x1x128xf32> to vector<1x128xf32>
    %26 = vector.shape_cast %23 : vector<1x128xf32> to vector<1x1x128xf32>
    tpu.vector_store %arg10[%c0_21, %c0_22, %c0_23], %26 {strides = array<i32>} : memref<1x1x128xf32, #tpu.memory_space<vmem>>, vector<1x1x128xf32>,
    return
  }
  func.func @transform_0(%arg0: i32) -> (i32, i32) {
    %c0_i32 = arith.constant 0 : i32
    %c0_i32_0 = arith.constant 0 : i32
    return %c0_i32, %arg0 : i32, i32
  }
  func.func @transform_1(%arg0: i32) -> (i32, i32) {
    %c0_i32 = arith.constant 0 : i32
    %c0_i32_0 = arith.constant 0 : i32
    return %c0_i32, %arg0 : i32, i32
  }
  func.func @transform_2(%arg0: i32) -> (i32, i32) {
    %c0_i32 = arith.constant 0 : i32
    %c0_i32_0 = arith.constant 0 : i32
    return %c0_i32, %arg0 : i32, i32
  }
  func.func @transform_3(%arg0: i32) -> (i32, i32) {
    %c0_i32 = arith.constant 0 : i32
    %c0_i32_0 = arith.constant 0 : i32
    %c0_i32_1 = arith.constant 0 : i32
    return %c0_i32, %c0_i32_0 : i32, i32
  }
  func.func @transform_4(%arg0: i32) -> (i32, i32) {
    %c0_i32 = arith.constant 0 : i32
    %c0_i32_0 = arith.constant 0 : i32
    %c0_i32_1 = arith.constant 0 : i32
    return %c0_i32, %c0_i32_0 : i32, i32
  }
  func.func @transform_5(%arg0: i32) -> (i32, i32) {
    %c0_i32 = arith.constant 0 : i32
    %c0_i32_0 = arith.constant 0 : i32
    %c0_i32_1 = arith.constant 0 : i32
    return %c0_i32, %c0_i32_0 : i32, i32
  }
  func.func @transform_6(%arg0: i32) -> (i32, i32) {
    %c0_i32 = arith.constant 0 : i32
    %c0_i32_0 = arith.constant 0 : i32
    %c0_i32_1 = arith.constant 0 : i32
    return %c0_i32, %c0_i32_0 : i32, i32
  }
  func.func @transform_7(%arg0: i32) -> (i32, i32) {
    %c0_i32 = arith.constant 0 : i32
    %c0_i32_0 = arith.constant 0 : i32
    %c0_i32_1 = arith.constant 0 : i32
    return %c0_i32, %c0_i32_0 : i32, i32
  }
  func.func @transform_8(%arg0: i32) -> (i32, i32) {
    %c0_i32 = arith.constant 0 : i32
    %c0_i32_0 = arith.constant 0 : i32
    %c0_i32_1 = arith.constant 0 : i32
    return %c0_i32, %c0_i32_0 : i32, i32
  }
  func.func @transform_9(%arg0: i32) -> (i32, i32, i32) {
    %c0_i32 = arith.constant 0 : i32
    %c0_i32_0 = arith.constant 0 : i32
    %c0_i32_1 = arith.constant 0 : i32
    return %arg0, %c0_i32, %c0_i32_0 : i32, i32, i32
  }
}

</mosaic_0001>

<llo_original>
// kernel: tpu_custom_call.1
$region0: #{tpu_custom_call.1}
  #allocation0 [shape = 'u32[]', space=smem, size = 0x4, offset = 0x4, fixed_abs, tag = 'smem constant byte address 0x4 - core index']
  #allocation1 [shape = 'u32[144,128]{1,0:T(1,128)}', space=vmem, size = 0x12000, scoped, tag = 'internal scratch']
  #allocation2 [shape = 'f32[1,1]{1,0:T(1,128)S(6)}', space=smem, size = 0x200, scoped, tag = 'scoped memory for tpu_custom_call.1']
  %s0 = inlined_call_operand.vmem [shape: f32[16,128], index: 0, kind: input, shape index: {}]
  %s1 = inlined_call_operand.vmem [shape: f32[16,128], index: 1, kind: input, shape index: {}]
  %s2 = inlined_call_operand.vmem [shape: f32[8,128], index: 2, kind: input, shape index: {}]
  %s3 = inlined_call_operand.vmem [shape: f32[64,16], index: 3, kind: input, shape index: {}]
  %s4 = inlined_call_operand.vmem [shape: f32[64,16], index: 4, kind: input, shape index: {}]
  %s5 = inlined_call_operand.vmem [shape: f32[64,8], index: 5, kind: input, shape index: {}]
  %s6 = inlined_call_operand.vmem [shape: f32[64,1], index: 6, kind: input, shape index: {}]
  %s7 = inlined_call_operand.vmem [shape: f32[64,1], index: 7, kind: input, shape index: {}]
  %s8 = inlined_call_operand.<no memory space> [shape: f32[1,1], index: 8, kind: input, shape index: {}]
  %s9 = inlined_call_operand.hbm [shape: f32[1,1,128], index: 9, kind: output, shape index: {}]
  %s10 = sld [smem:[#allocation0]]
  $region46: #{tpu_custom_call.1} parent=0
    _
  %s12 = ssub.s32 1, %s10
  %s13 = scalar_select 0, %s12, %s10
  %14 = sst [smem:[#allocation2]] %s8
  $region1: #{tpu_custom_call.1} parent=0
    #allocation3 [shape = 'u8[512]{0}', space=vmem, size = 0x400, scoped, tag = 'output window, operand 0, single buffered']
    #allocation4 [shape = 's32[1]{0}', space=sflag, size = 0x4, scoped, tag = 'scoped memory for tpu_custom_call.1']
    %15 = vsyncpa [#allocation4], 0
    // Predicated region
    $region2: #{tpu_custom_call.1} parent=1 // pred_check
      _
    $region3: #{tpu_custom_call.1} parent=1 // pred_check_branch
      %17 = sbr.rel (0) target = $region5
    $region4: #{tpu_custom_call.1} parent=1 // pred_region
      _
    $region5: #{tpu_custom_call.1} parent=1 // pred_fallthru
      _
    // Predicated region
    $region6: #{tpu_custom_call.1} parent=1 // pred_check
      _
    $region7: #{tpu_custom_call.1} parent=1 // pred_check_branch
      %19 = sbr.rel (0) target = $region9
    $region8: #{tpu_custom_call.1} parent=1 // pred_region
      _
    $region9: #{tpu_custom_call.1} parent=1 // pred_fallthru
      _
    // Predicated region
    $region10: #{tpu_custom_call.1} parent=1 // pred_check
      _
    $region11: #{tpu_custom_call.1} parent=1 // pred_check_branch
      %21 = sbr.rel (0) target = $region13
    $region12: #{tpu_custom_call.1} parent=1 // pred_region
      _
    $region13: #{tpu_custom_call.1} parent=1 // pred_fallthru
      _
    // Predicated region
    $region14: #{tpu_custom_call.1} parent=1 // pred_check
      _
    $region15: #{tpu_custom_call.1} parent=1 // pred_check_branch
      %23 = sbr.rel (0) target = $region17
    $region16: #{tpu_custom_call.1} parent=1 // pred_region
      _
    $region17: #{tpu_custom_call.1} parent=1 // pred_fallthru
      _
    // Predicated region
    $region18: #{tpu_custom_call.1} parent=1 // pred_check
      _
    $region19: #{tpu_custom_call.1} parent=1 // pred_check_branch
      %25 = sbr.rel (0) target = $region21
    $region20: #{tpu_custom_call.1} parent=1 // pred_region
      _
    $region21: #{tpu_custom_call.1} parent=1 // pred_fallthru
      _
    // Predicated region
    $region22: #{tpu_custom_call.1} parent=1 // pred_check
      _
    $region23: #{tpu_custom_call.1} parent=1 // pred_check_branch
      %27 = sbr.rel (0) target = $region25
    $region24: #{tpu_custom_call.1} parent=1 // pred_region
      _
    $region25: #{tpu_custom_call.1} parent=1 // pred_fallthru
      _
    // Predicated region
    $region26: #{tpu_custom_call.1} parent=1 // pred_check
      _
    $region27: #{tpu_custom_call.1} parent=1 // pred_check_branch
      %29 = sbr.rel (0) target = $region29
    $region28: #{tpu_custom_call.1} parent=1 // pred_region
      _
    $region29: #{tpu_custom_call.1} parent=1 // pred_fallthru
      _
    // Predicated region
    $region30: #{tpu_custom_call.1} parent=1 // pred_check
      _
    $region31: #{tpu_custom_call.1} parent=1 // pred_check_branch
      %31 = sbr.rel (0) target = $region33
    $region32: #{tpu_custom_call.1} parent=1 // pred_region
      _
    $region33: #{tpu_custom_call.1} parent=1 // pred_fallthru
      _
    // Predicated region
    $region34: #{tpu_custom_call.1} parent=1 // pred_check
      _
    $region35: #{tpu_custom_call.1} parent=1 // pred_check_branch
      %33 = sbr.rel (0) target = $region37
    $region36: #{tpu_custom_call.1} parent=1 // pred_region
      _
    $region37: #{tpu_custom_call.1} parent=1 // pred_fallthru
      _
    %v34 = vld [vmem:[%s3] sm:$0xff]
    %v35 = vld [vmem:[%s3 + $0x8] sm:$0xff]
    %v36 = vld [vmem:[%s3 + $0x10] sm:$0xff]
    %v37 = vld [vmem:[%s3 + $0x18] sm:$0xff]
    %v38 = vld [vmem:[%s3 + $0x20] sm:$0xff]
    %v39 = vld [vmem:[%s3 + $0x28] sm:$0xff]
    %v40 = vld [vmem:[%s3 + $0x30] sm:$0xff]
    %v41 = vld [vmem:[%s3 + $0x38] sm:$0xff]
    %v42 = vld [vmem:[%s0] sm:$0xff]
    %v43 = vld [vmem:[%s0 + $0x8] sm:$0xff]
    %v44 = vld [vmem:[%s4] sm:$0xff]
    %v45 = vld [vmem:[%s4 + $0x8] sm:$0xff]
    %v46 = vld [vmem:[%s4 + $0x10] sm:$0xff]
    %v47 = vld [vmem:[%s4 + $0x18] sm:$0xff]
    %v48 = vld [vmem:[%s4 + $0x20] sm:$0xff]
    %v49 = vld [vmem:[%s4 + $0x28] sm:$0xff]
    %v50 = vld [vmem:[%s4 + $0x30] sm:$0xff]
    %v51 = vld [vmem:[%s4 + $0x38] sm:$0xff]
    %v52 = vld [vmem:[%s1] sm:$0xff]
    %v53 = vld [vmem:[%s1 + $0x8] sm:$0xff]
    %vm54 = vcmask 130048
    %v56 = vsel %vm54, %v44, 0
    %v59 = vsel %vm54, %v45, 0
    %v62 = vsel %vm54, %v46, 0
    %v65 = vsel %vm54, %v47, 0
    %v68 = vsel %vm54, %v48, 0
    %v71 = vsel %vm54, %v49, 0
    %v74 = vsel %vm54, %v50, 0
    %v77 = vsel %vm54, %v51, 0
    %79 = vmatprep.subr.mxu0 0.0
    %80 = vmatpush1.msra.mxu0 %v52
    %81 = vmatprep.subr.mxu0 0.0
    %82 = vmatpush1.msra.mxu0 %v53
    %83 = vmatprep.subr.mxu0 0.0
    %84 = vmatpush1.msra.mxu0 0.0
    %85 = vmatprep.subr.mxu0 0.0
    %86 = vmatpush1.msra.mxu0 0.0
    %87 = vmatprep.subr.mxu0 0.0
    %88 = vmatpush1.msra.mxu0 0.0
    %89 = vmatprep.subr.mxu0 0.0
    %90 = vmatpush1.msra.mxu0 0.0
    %91 = vmatprep.subr.mxu0 0.0
    %92 = vmatpush1.msra.mxu0 0.0
    %93 = vmatprep.subr.mxu0 0.0
    %94 = vmatpush1.msra.mxu0 0.0
    %95 = vmatprep.subr.mxu0 0.0
    %96 = vmatpush1.msra.mxu0 0.0
    %97 = vmatprep.subr.mxu0 0.0
    %98 = vmatpush1.msra.mxu0 0.0
    %99 = vmatprep.subr.mxu0 0.0
    %100 = vmatpush1.msra.mxu0 0.0
    %101 = vmatprep.subr.mxu0 0.0
    %102 = vmatpush1.msra.mxu0 0.0
    %103 = vmatprep.subr.mxu0 0.0
    %104 = vmatpush1.msra.mxu0 0.0
    %105 = vmatprep.subr.mxu0 0.0
    %106 = vmatpush1.msra.mxu0 0.0
    %107 = vmatprep.subr.mxu0 0.0
    %108 = vmatpush1.msra.mxu0 0.0
    %109 = vmatprep.subr.mxu0 0.0
    %110 = vmatpush1.msra.mxu0 0.0
    %111 = vmatprep.subr.mxu0 0.0
    %112 = vmatpush1.msra.mxu0 0.0
    %113 = vmatprep.subr.mxu0 0.0
    %114 = vmatpush1.msra.mxu0 0.0
    %115 = vmatprep.subr.mxu0 0.0
    %116 = vmatpush1.msra.mxu0 0.0
    %117 = vmatprep.subr.mxu0 0.0
    %118 = vmatpush1.msra.mxu0 0.0
    %119 = vmatprep.subr.mxu0 0.0
    %120 = vmatpush1.msra.mxu0 0.0
    %121 = vmatprep.subr.mxu0 0.0
    %122 = vmatpush1.msra.mxu0 0.0
    %123 = vmatprep.subr.mxu0 0.0
    %124 = vmatpush1.msra.mxu0 0.0
    %125 = vmatprep.subr.mxu0 0.0
    %126 = vmatpush1.msra.mxu0 0.0
    %127 = vmatprep.subr.mxu0 0.0
    %128 = vmatpush1.msra.mxu0 0.0
    %129 = vmatprep.subr.mxu0 0.0
    %130 = vmatpush1.msra.mxu0 0.0
    %131 = vmatprep.subr.mxu0 0.0
    %132 = vmatpush1.msra.mxu0 0.0
    %133 = vmatprep.subr.mxu0 0.0
    %134 = vmatpush1.msra.mxu0 0.0
    %135 = vmatprep.subr.mxu0 0.0
    %136 = vmatpush1.msra.mxu0 0.0
    %137 = vmatprep.subr.mxu0 0.0
    %138 = vmatpush1.msra.mxu0 0.0
    %139 = vmatprep.subr.mxu0 0.0
    %140 = vmatpush1.msra.mxu0 0.0
    %141 = vmatprep.subr.mxu0 0.0
    %142 = vmatpush1.msra.mxu0 0.0
    %143 = vmatprep.mubr.f32.mxu0 0.0
    %144 = vmatmul.mubr.f32.gmra.mrb[0].mxu0 %v56
    %v145 = vpop.f32.mrb[0].mxu0
    %v146 = vadd.f32 0.0, %v145
    %v147 = vpop.f32.mrb[0].mxu0
    %148 = vmatprep.mubr.f32.mxu0 0.0
    %149 = vmatmul.mubr.f32.gmra.mrb[0].mxu0 %v59
    %v150 = vpop.f32.mrb[0].mxu0
    %v151 = vadd.f32 0.0, %v150
    %v152 = vpop.f32.mrb[0].mxu0
    %153 = vmatprep.mubr.f32.mxu0 0.0
    %154 = vmatmul.mubr.f32.gmra.mrb[0].mxu0 %v62
    %v155 = vpop.f32.mrb[0].mxu0
    %v156 = vadd.f32 0.0, %v155
    %v157 = vpop.f32.mrb[0].mxu0
    %158 = vmatprep.mubr.f32.mxu0 0.0
    %159 = vmatmul.mubr.f32.gmra.mrb[0].mxu0 %v65
    %v160 = vpop.f32.mrb[0].mxu0
    %v161 = vadd.f32 0.0, %v160
    %v162 = vpop.f32.mrb[0].mxu0
    %163 = vmatprep.mubr.f32.mxu0 0.0
    %164 = vmatmul.mubr.f32.gmra.mrb[0].mxu0 %v68
    %v165 = vpop.f32.mrb[0].mxu0
    %v166 = vadd.f32 0.0, %v165
    %v167 = vpop.f32.mrb[0].mxu0
    %168 = vmatprep.mubr.f32.mxu0 0.0
    %169 = vmatmul.mubr.f32.gmra.mrb[0].mxu0 %v71
    %v170 = vpop.f32.mrb[0].mxu0
    %v171 = vadd.f32 0.0, %v170
    %v172 = vpop.f32.mrb[0].mxu0
    %173 = vmatprep.mubr.f32.mxu0 0.0
    %174 = vmatmul.mubr.f32.gmra.mrb[0].mxu0 %v74
    %v175 = vpop.f32.mrb[0].mxu0
    %v176 = vadd.f32 0.0, %v175
    %v177 = vpop.f32.mrb[0].mxu0
    %178 = vmatprep.mubr.f32.mxu0 0.0
    %179 = vmatmul.mubr.f32.gmra.mrb[0].mxu0 %v77
    %v180 = vpop.f32.mrb[0].mxu0
    %v181 = vadd.f32 0.0, %v180
    %v182 = vpop.f32.mrb[0].mxu0
    %183 = vdwg.mxu0
    %v185 = vsel %vm54, %v34, 0
    %v188 = vsel %vm54, %v35, 0
    %v191 = vsel %vm54, %v36, 0
    %v194 = vsel %vm54, %v37, 0
    %v197 = vsel %vm54, %v38, 0
    %v200 = vsel %vm54, %v39, 0
    %v203 = vsel %vm54, %v40, 0
    %v206 = vsel %vm54, %v41, 0
    %208 = vmatprep.subr.mxu0 0.0
    %209 = vmatpush1.msra.mxu0 %v42
    %210 = vmatprep.subr.mxu0 0.0
    %211 = vmatpush1.msra.mxu0 %v43
    %212 = vmatprep.subr.mxu0 0.0
    %213 = vmatpush1.msra.mxu0 0.0
    %214 = vmatprep.subr.mxu0 0.0
    %215 = vmatpush1.msra.mxu0 0.0
    %216 = vmatprep.subr.mxu0 0.0
    %217 = vmatpush1.msra.mxu0 0.0
    %218 = vmatprep.subr.mxu0 0.0
    %219 = vmatpush1.msra.mxu0 0.0
    %220 = vmatprep.subr.mxu0 0.0
    %221 = vmatpush1.msra.mxu0 0.0
    %222 = vmatprep.subr.mxu0 0.0
    %223 = vmatpush1.msra.mxu0 0.0
    %224 = vmatprep.subr.mxu0 0.0
    %225 = vmatpush1.msra.mxu0 0.0
    %226 = vmatprep.subr.mxu0 0.0
    %227 = vmatpush1.msra.mxu0 0.0
    %228 = vmatprep.subr.mxu0 0.0
    %229 = vmatpush1.msra.mxu0 0.0
    %230 = vmatprep.subr.mxu0 0.0
    %231 = vmatpush1.msra.mxu0 0.0
    %232 = vmatprep.subr.mxu0 0.0
    %233 = vmatpush1.msra.mxu0 0.0
    %234 = vmatprep.subr.mxu0 0.0
    %235 = vmatpush1.msra.mxu0 0.0
    %236 = vmatprep.subr.mxu0 0.0
    %237 = vmatpush1.msra.mxu0 0.0
    %238 = vmatprep.subr.mxu0 0.0
    %239 = vmatpush1.msra.mxu0 0.0
    %240 = vmatprep.subr.mxu0 0.0
    %241 = vmatpush1.msra.mxu0 0.0
    %242 = vmatprep.subr.mxu0 0.0
    %243 = vmatpush1.msra.mxu0 0.0
    %244 = vmatprep.subr.mxu0 0.0
    %245 = vmatpush1.msra.mxu0 0.0
    %246 = vmatprep.subr.mxu0 0.0
    %247 = vmatpush1.msra.mxu0 0.0
    %248 = vmatprep.subr.mxu0 0.0
    %249 = vmatpush1.msra.mxu0 0.0
    %250 = vmatprep.subr.mxu0 0.0
    %251 = vmatpush1.msra.mxu0 0.0
    %252 = vmatprep.subr.mxu0 0.0
    %253 = vmatpush1.msra.mxu0 0.0
    %254 = vmatprep.subr.mxu0 0.0
    %255 = vmatpush1.msra.mxu0 0.0
    %256 = vmatprep.subr.mxu0 0.0
    %257 = vmatpush1.msra.mxu0 0.0
    %258 = vmatprep.subr.mxu0 0.0
    %259 = vmatpush1.msra.mxu0 0.0
    %260 = vmatprep.subr.mxu0 0.0
    %261 = vmatpush1.msra.mxu0 0.0
    %262 = vmatprep.subr.mxu0 0.0
    %263 = vmatpush1.msra.mxu0 0.0
    %264 = vmatprep.subr.mxu0 0.0
    %265 = vmatpush1.msra.mxu0 0.0
    %266 = vmatprep.subr.mxu0 0.0
    %267 = vmatpush1.msra.mxu0 0.0
    %268 = vmatprep.subr.mxu0 0.0
    %269 = vmatpush1.msra.mxu0 0.0
    %270 = vmatprep.subr.mxu0 0.0
    %271 = vmatpush1.msra.mxu0 0.0
    %272 = vmatprep.mubr.f32.mxu0 0.0
    %273 = vmatmul.mubr.f32.gmra.mrb[0].mxu0 %v185
    %v274 = vpop.f32.mrb[0].mxu0
    %v275 = vadd.f32 %v146, %v274
    %v276 = vpop.f32.mrb[0].mxu0
    %277 = vmatprep.mubr.f32.mxu0 0.0
    %278 = vmatmul.mubr.f32.gmra.mrb[0].mxu0 %v188
    %v279 = vpop.f32.mrb[0].mxu0
    %v280 = vadd.f32 %v151, %v279
    %v281 = vpop.f32.mrb[0].mxu0
    %282 = vmatprep.mubr.f32.mxu0 0.0
    %283 = vmatmul.mubr.f32.gmra.mrb[0].mxu0 %v191
    %v284 = vpop.f32.mrb[0].mxu0
    %v285 = vadd.f32 %v156, %v284
    %v286 = vpop.f32.mrb[0].mxu0
    %287 = vmatprep.mubr.f32.mxu0 0.0
    %288 = vmatmul.mubr.f32.gmra.mrb[0].mxu0 %v194
    %v289 = vpop.f32.mrb[0].mxu0
    %v290 = vadd.f32 %v161, %v289
    %v291 = vpop.f32.mrb[0].mxu0
    %292 = vmatprep.mubr.f32.mxu0 0.0
    %293 = vmatmul.mubr.f32.gmra.mrb[0].mxu0 %v197
    %v294 = vpop.f32.mrb[0].mxu0
    %v295 = vadd.f32 %v166, %v294
    %v296 = vpop.f32.mrb[0].mxu0
    %297 = vmatprep.mubr.f32.mxu0 0.0
    %298 = vmatmul.mubr.f32.gmra.mrb[0].mxu0 %v200
    %v299 = vpop.f32.mrb[0].mxu0
    %v300 = vadd.f32 %v171, %v299
    %v301 = vpop.f32.mrb[0].mxu0
    %302 = vmatprep.mubr.f32.mxu0 0.0
    %303 = vmatmul.mubr.f32.gmra.mrb[0].mxu0 %v203
    %v304 = vpop.f32.mrb[0].mxu0
    %v305 = vadd.f32 %v176, %v304
    %v306 = vpop.f32.mrb[0].mxu0
    %307 = vmatprep.mubr.f32.mxu0 0.0
    %308 = vmatmul.mubr.f32.gmra.mrb[0].mxu0 %v206
    %v309 = vpop.f32.mrb[0].mxu0
    %v310 = vadd.f32 %v181, %v309
    %v311 = vpop.f32.mrb[0].mxu0
    %312 = vdwg.mxu0
    %v313 = vld [vmem:[%s5] sm:$0xff]
    %v314 = vld [vmem:[%s5 + $0x8] sm:$0xff]
    %v315 = vld [vmem:[%s5 + $0x10] sm:$0xff]
    %v316 = vld [vmem:[%s5 + $0x18] sm:$0xff]
    %v317 = vld [vmem:[%s5 + $0x20] sm:$0xff]
    %v318 = vld [vmem:[%s5 + $0x28] sm:$0xff]
    %v319 = vld [vmem:[%s5 + $0x30] sm:$0xff]
    %v320 = vld [vmem:[%s5 + $0x38] sm:$0xff]
    %v321 = vld [vmem:[%s2] sm:$0xff]
    %vm322 = vcmask 64512
    %v324 = vsel %vm322, %v313, 0
    %v327 = vsel %vm322, %v314, 0
    %v330 = vsel %vm322, %v315, 0
    %v333 = vsel %vm322, %v316, 0
    %v336 = vsel %vm322, %v317, 0
    %v339 = vsel %vm322, %v318, 0
    %v342 = vsel %vm322, %v319, 0
    %v345 = vsel %vm322, %v320, 0
    %347 = vmatprep.subr.mxu0 0.0
    %348 = vmatpush1.msra.mxu0 %v321
    %349 = vmatprep.subr.mxu0 0.0
    %350 = vmatpush1.msra.mxu0 0.0
    %351 = vmatprep.subr.mxu0 0.0
    %352 = vmatpush1.msra.mxu0 0.0
    %353 = vmatprep.subr.mxu0 0.0
    %354 = vmatpush1.msra.mxu0 0.0
    %355 = vmatprep.subr.mxu0 0.0
    %356 = vmatpush1.msra.mxu0 0.0
    %357 = vmatprep.subr.mxu0 0.0
    %358 = vmatpush1.msra.mxu0 0.0
    %359 = vmatprep.subr.mxu0 0.0
    %360 = vmatpush1.msra.mxu0 0.0
    %361 = vmatprep.subr.mxu0 0.0
    %362 = vmatpush1.msra.mxu0 0.0
    %363 = vmatprep.subr.mxu0 0.0
    %364 = vmatpush1.msra.mxu0 0.0
    %365 = vmatprep.subr.mxu0 0.0
    %366 = vmatpush1.msra.mxu0 0.0
    %367 = vmatprep.subr.mxu0 0.0
    %368 = vmatpush1.msra.mxu0 0.0
    %369 = vmatprep.subr.mxu0 0.0
    %370 = vmatpush1.msra.mxu0 0.0
    %371 = vmatprep.subr.mxu0 0.0
    %372 = vmatpush1.msra.mxu0 0.0
    %373 = vmatprep.subr.mxu0 0.0
    %374 = vmatpush1.msra.mxu0 0.0
    %375 = vmatprep.subr.mxu0 0.0
    %376 = vmatpush1.msra.mxu0 0.0
    %377 = vmatprep.subr.mxu0 0.0
    %378 = vmatpush1.msra.mxu0 0.0
    %379 = vmatprep.subr.mxu0 0.0
    %380 = vmatpush1.msra.mxu0 0.0
    %381 = vmatprep.subr.mxu0 0.0
    %382 = vmatpush1.msra.mxu0 0.0
    %383 = vmatprep.subr.mxu0 0.0
    %384 = vmatpush1.msra.mxu0 0.0
    %385 = vmatprep.subr.mxu0 0.0
    %386 = vmatpush1.msra.mxu0 0.0
    %387 = vmatprep.subr.mxu0 0.0
    %388 = vmatpush1.msra.mxu0 0.0
    %389 = vmatprep.subr.mxu0 0.0
    %390 = vmatpush1.msra.mxu0 0.0
    %391 = vmatprep.subr.mxu0 0.0
    %392 = vmatpush1.msra.mxu0 0.0
    %393 = vmatprep.subr.mxu0 0.0
    %394 = vmatpush1.msra.mxu0 0.0
    %395 = vmatprep.subr.mxu0 0.0
    %396 = vmatpush1.msra.mxu0 0.0
    %397 = vmatprep.subr.mxu0 0.0
    %398 = vmatpush1.msra.mxu0 0.0
    %399 = vmatprep.subr.mxu0 0.0
    %400 = vmatpush1.msra.mxu0 0.0
    %401 = vmatprep.subr.mxu0 0.0
    %402 = vmatpush1.msra.mxu0 0.0
    %403 = vmatprep.subr.mxu0 0.0
    %404 = vmatpush1.msra.mxu0 0.0
    %405 = vmatprep.subr.mxu0 0.0
    %406 = vmatpush1.msra.mxu0 0.0
    %407 = vmatprep.subr.mxu0 0.0
    %408 = vmatpush1.msra.mxu0 0.0
    %409 = vmatprep.subr.mxu0 0.0
    %410 = vmatpush1.msra.mxu0 0.0
    %411 = vmatprep.mubr.f32.mxu0 0.0
    %412 = vmatmul.mubr.f32.gmra.mrb[0].mxu0 %v324
    %v413 = vpop.f32.mrb[0].mxu0
    %v414 = vadd.f32 0.0, %v413
    %v415 = vpop.f32.mrb[0].mxu0
    %416 = vmatprep.mubr.f32.mxu0 0.0
    %417 = vmatmul.mubr.f32.gmra.mrb[0].mxu0 %v327
    %v418 = vpop.f32.mrb[0].mxu0
    %v419 = vadd.f32 0.0, %v418
    %v420 = vpop.f32.mrb[0].mxu0
    %421 = vmatprep.mubr.f32.mxu0 0.0
    %422 = vmatmul.mubr.f32.gmra.mrb[0].mxu0 %v330
    %v423 = vpop.f32.mrb[0].mxu0
    %v424 = vadd.f32 0.0, %v423
    %v425 = vpop.f32.mrb[0].mxu0
    %426 = vmatprep.mubr.f32.mxu0 0.0
    %427 = vmatmul.mubr.f32.gmra.mrb[0].mxu0 %v333
    %v428 = vpop.f32.mrb[0].mxu0
    %v429 = vadd.f32 0.0, %v428
    %v430 = vpop.f32.mrb[0].mxu0
    %431 = vmatprep.mubr.f32.mxu0 0.0
    %432 = vmatmul.mubr.f32.gmra.mrb[0].mxu0 %v336
    %v433 = vpop.f32.mrb[0].mxu0
    %v434 = vadd.f32 0.0, %v433
    %v435 = vpop.f32.mrb[0].mxu0
    %436 = vmatprep.mubr.f32.mxu0 0.0
    %437 = vmatmul.mubr.f32.gmra.mrb[0].mxu0 %v339
    %v438 = vpop.f32.mrb[0].mxu0
    %v439 = vadd.f32 0.0, %v438
    %v440 = vpop.f32.mrb[0].mxu0
    %441 = vmatprep.mubr.f32.mxu0 0.0
    %442 = vmatmul.mubr.f32.gmra.mrb[0].mxu0 %v342
    %v443 = vpop.f32.mrb[0].mxu0
    %v444 = vadd.f32 0.0, %v443
    %v445 = vpop.f32.mrb[0].mxu0
    %446 = vmatprep.mubr.f32.mxu0 0.0
    %447 = vmatmul.mubr.f32.gmra.mrb[0].mxu0 %v345
    %v448 = vpop.f32.mrb[0].mxu0
    %v449 = vadd.f32 0.0, %v448
    %v450 = vpop.f32.mrb[0].mxu0
    %451 = vdwg.mxu0
    %v452 = vadd.f32 %v275, %v414
    %v453 = vadd.f32 %v280, %v419
    %v454 = vadd.f32 %v285, %v424
    %v455 = vadd.f32 %v290, %v429
    %v456 = vadd.f32 %v295, %v434
    %v457 = vadd.f32 %v300, %v439
    %v458 = vadd.f32 %v305, %v444
    %v459 = vadd.f32 %v310, %v449
    %v460 = vld [vmem:[%s6] sm:$0xff]
    %v461 = vld [vmem:[%s6 + $0x8] sm:$0xff]
    %v462 = vld [vmem:[%s6 + $0x10] sm:$0xff]
    %v463 = vld [vmem:[%s6 + $0x18] sm:$0xff]
    %v464 = vld [vmem:[%s6 + $0x20] sm:$0xff]
    %v465 = vld [vmem:[%s6 + $0x28] sm:$0xff]
    %v466 = vld [vmem:[%s6 + $0x30] sm:$0xff]
    %v467 = vld [vmem:[%s6 + $0x38] sm:$0xff]
    %469 = vset.pattern.permute.xlu0 0
    %470 = vperm.xlu0 %469, %v460
    %v471 = vpop.permute.xlu0 %470
    %474 = vset.pattern.permute.xlu0 0
    %475 = vperm.xlu0 %474, %v461
    %v476 = vpop.permute.xlu0 %475
    %479 = vset.pattern.permute.xlu0 0
    %480 = vperm.xlu0 %479, %v462
    %v481 = vpop.permute.xlu0 %480
    %484 = vset.pattern.permute.xlu0 0
    %485 = vperm.xlu0 %484, %v463
    %v486 = vpop.permute.xlu0 %485
    %489 = vset.pattern.permute.xlu0 0
    %490 = vperm.xlu0 %489, %v464
    %v491 = vpop.permute.xlu0 %490
    %494 = vset.pattern.permute.xlu0 0
    %495 = vperm.xlu0 %494, %v465
    %v496 = vpop.permute.xlu0 %495
    %499 = vset.pattern.permute.xlu0 0
    %500 = vperm.xlu0 %499, %v466
    %v501 = vpop.permute.xlu0 %500
    %504 = vset.pattern.permute.xlu0 0
    %505 = vperm.xlu0 %504, %v467
    %v506 = vpop.permute.xlu0 %505
    %v508 = vadd.f32 %v452, %v471
    %v509 = vadd.f32 %v453, %v476
    %v510 = vadd.f32 %v454, %v481
    %v511 = vadd.f32 %v455, %v486
    %v512 = vadd.f32 %v456, %v491
    %v513 = vadd.f32 %v457, %v496
    %v514 = vadd.f32 %v458, %v501
    %v515 = vadd.f32 %v459, %v506
    %v516 = vmax.f32 %v508, 0.0
    %v517 = vmax.f32 %v509, 0.0
    %v518 = vmax.f32 %v510, 0.0
    %v519 = vmax.f32 %v511, 0.0
    %v520 = vmax.f32 %v512, 0.0
    %v521 = vmax.f32 %v513, 0.0
    %v522 = vmax.f32 %v514, 0.0
    %v523 = vmax.f32 %v515, 0.0
    %v524 = vld [vmem:[%s7] sm:$0xff]
    %v525 = vld [vmem:[%s7 + $0x8] sm:$0xff]
    %v526 = vld [vmem:[%s7 + $0x10] sm:$0xff]
    %v527 = vld [vmem:[%s7 + $0x18] sm:$0xff]
    %v528 = vld [vmem:[%s7 + $0x20] sm:$0xff]
    %v529 = vld [vmem:[%s7 + $0x28] sm:$0xff]
    %v530 = vld [vmem:[%s7 + $0x30] sm:$0xff]
    %v531 = vld [vmem:[%s7 + $0x38] sm:$0xff]
    %533 = vset.pattern.permute.xlu0 0
    %534 = vperm.xlu0 %533, %v524
    %v535 = vpop.permute.xlu0 %534
    %538 = vset.pattern.permute.xlu0 0
    %539 = vperm.xlu0 %538, %v525
    %v540 = vpop.permute.xlu0 %539
    %543 = vset.pattern.permute.xlu0 0
    %544 = vperm.xlu0 %543, %v526
    %v545 = vpop.permute.xlu0 %544
    %548 = vset.pattern.permute.xlu0 0
    %549 = vperm.xlu0 %548, %v527
    %v550 = vpop.permute.xlu0 %549
    %553 = vset.pattern.permute.xlu0 0
    %554 = vperm.xlu0 %553, %v528
    %v555 = vpop.permute.xlu0 %554
    %558 = vset.pattern.permute.xlu0 0
    %559 = vperm.xlu0 %558, %v529
    %v560 = vpop.permute.xlu0 %559
    %563 = vset.pattern.permute.xlu0 0
    %564 = vperm.xlu0 %563, %v530
    %v565 = vpop.permute.xlu0 %564
    %568 = vset.pattern.permute.xlu0 0
    %569 = vperm.xlu0 %568, %v531
    %v570 = vpop.permute.xlu0 %569
    %v572 = vmul.f32 %v516, %v535
    %v573 = vmul.f32 %v517, %v540
    %v574 = vmul.f32 %v518, %v545
    %v575 = vmul.f32 %v519, %v550
    %v576 = vmul.f32 %v520, %v555
    %v577 = vmul.f32 %v521, %v560
    %v578 = vmul.f32 %v522, %v565
    %v579 = vmul.f32 %v523, %v570
    %v580 = vadd.f32 %v572, %v573
    %v581 = vadd.f32 %v580, %v574
    %v582 = vadd.f32 %v581, %v575
    %v583 = vadd.f32 %v582, %v576
    %v584 = vadd.f32 %v583, %v577
    %v585 = vadd.f32 %v584, %v578
    %v586 = vadd.f32 %v585, %v579
    %v587 = vrot.slane %v586, 4
    %v588 = vadd.f32 %v586, %v587
    %v589 = vrot.slane %v588, 2
    %v590 = vadd.f32 %v588, %v589
    %v591 = vrot.slane %v590, 1
    %v592 = vadd.f32 %v590, %v591
    %s593 = sld [smem:[#allocation2]]
    %v594 = vstv %s593
    %v595 = vadd.f32 %v592, %v594
    %596 = vst [vmem:[#allocation3] sm:$0x1] %v595
    // Predicated region
    $region38: #{tpu_custom_call.1} parent=1 // pred_check
      _
    $region39: #{tpu_custom_call.1} parent=1 // pred_check_branch
      %598 = sbr.rel (0) target = $region41
    $region40: #{tpu_custom_call.1} parent=1 // pred_region
      %s600 = ssub.s32 16, 16
      %601 = vsyncadd [#allocation4], %s600
      %s603 = sshll.u32 [#allocation3], 4
      %s604 = int_to_ptr.vmem [resolvable:$true] %s603
      %606 = dma.vmem_to_hbm [thread:$0]  %s604, 16, %s9, [#allocation4]
    $region41: #{tpu_custom_call.1} parent=1 // pred_fallthru
      _
    // Predicated region
    $region42: #{tpu_custom_call.1} parent=1 // pred_check
      _
    $region43: #{tpu_custom_call.1} parent=1 // pred_check_branch
      %608 = sbr.rel (0) target = $region45
    $region44: #{tpu_custom_call.1} parent=1 // pred_region
      %609 = dma.done [#allocation4], 16
    $region45: #{tpu_custom_call.1} parent=1 // pred_fallthru
      _
    %610 = vsyncpa [#allocation4], 1

</llo_original>
